<compile_context>
chip_gen: v6e
topology: v6e:2x2x1
jax: 0.10.0
libtpu: 0.0.40
codegen_flags: <defaults>
</compile_context>

<pallas_src>
import jax
import jax.numpy as jnp
from jax.experimental import pallas as pl
from jax.experimental.pallas import tpu as pltpu

LN_EPS = 1e-5
NEG_INF = -1e10


def _round_up(x, m):
    return ((x + m - 1) // m) * m


def _make_actor_kernel(obs_dim, hidden, act_dim):
    inv_obs = 1.0 / obs_dim
    inv_hid = 1.0 / hidden

    def _ln(x, ones_col, inv_d):
        # LayerNorm WITHOUT affine (gamma/beta folded into the next linear).
        # Row sum and centered sum-of-squares go through the idle MXU
        # (ones-column matmuls) instead of XLU cross-lane reductions.
        mu = jnp.dot(x, ones_col, preferred_element_type=jnp.float32) * inv_d
        xc = x - mu
        var = jnp.dot(xc * xc, ones_col, preferred_element_type=jnp.float32) * inv_d
        return xc * jax.lax.rsqrt(var + LN_EPS)

    def kernel(obs_ref, avail_ref, w1_ref, w2_ref, wa_ref, bias_ref, out_ref):
        ones_obs = jnp.ones((obs_dim, 1), jnp.float32)
        ones_hid = jnp.ones((hidden, 1), jnp.float32)
        ones_act = jnp.ones((act_dim, 1), jnp.float32)

        biases = bias_ref[...]                       # (3, P) f32, one DMA
        b1 = biases[0:1, :hidden]
        b2 = biases[1:2, :hidden]
        ba = biases[2:3, :act_dim]

        # ---- feature_norm (affine folded into W1/b1) ----
        x = _ln(obs_ref[...], ones_obs, inv_obs)     # (TM, D) f32

        # ---- fc1: Linear + ReLU + LayerNorm (affine folded into W2/b2) ----
        h = jnp.dot(x, w1_ref[...], preferred_element_type=jnp.float32) + b1
        h = _ln(jnp.maximum(h, 0.0), ones_hid, inv_hid)

        # ---- fc2 (layer_N = 1): Linear + ReLU + LayerNorm (affine -> Wa/ba) ----
        h = jnp.dot(h, w2_ref[...], preferred_element_type=jnp.float32) + b2
        h = _ln(jnp.maximum(h, 0.0), ones_hid, inv_hid)

        # ---- ACTLayer: logits, availability mask applied IN-KERNEL ----
        logits = jnp.dot(h, wa_ref[...], preferred_element_type=jnp.float32) + ba
        logits = jnp.where(avail_ref[...] > 0.5, logits, NEG_INF)

        # ---- deterministic action = argmax, log_prob of that action ----
        max_l = jnp.max(logits, axis=-1, keepdims=True)          # (TM, 1)
        idx = jax.lax.broadcasted_iota(jnp.int32, logits.shape, 1)
        # first index attaining the max (matches torch argmax tie-breaking)
        act = jnp.min(jnp.where(logits == max_l, idx, act_dim),
                      axis=-1, keepdims=True)
        # softmax denominator via MXU ones-column matmul
        sum_exp = jnp.dot(jnp.exp(logits - max_l), ones_act,
                          preferred_element_type=jnp.float32)
        logp = -jnp.log(sum_exp)                 # = logits[argmax] - logsumexp

        # Lane-dense store: block is (2, TM) with TM on the lane axis.
        out_ref[...] = jnp.concatenate([logp, act.astype(jnp.float32)],
                                       axis=-1).T                 # (2, TM)

    return kernel


def prepare_params(params):
    """Fold LayerNorm affines into the following linears and pack the biases."""
    (ln0_g, ln0_b, w1, b1, ln1_g, ln1_b, w2, b2, ln2_g, ln2_b, wa, ba) = params
    w1f = ln0_g.reshape(-1, 1) * w1          # diag(g0) @ W1
    b1f = ln0_b @ w1 + b1
    w2f = ln1_g.reshape(-1, 1) * w2          # diag(g1) @ W2
    b2f = ln1_b @ w2 + b2
    waf = ln2_g.reshape(-1, 1) * wa          # diag(g2) @ Wa
    baf = ln2_b @ wa + ba

    hidden = w1.shape[1]
    act_dim = wa.shape[1]
    p = max(hidden, act_dim)
    bias_pack = jnp.zeros((3, p), jnp.float32)
    bias_pack = bias_pack.at[0, :hidden].set(b1f[0])
    bias_pack = bias_pack.at[1, :hidden].set(b2f[0])
    bias_pack = bias_pack.at[2, :act_dim].set(baf[0])

    return (w1f.astype(jnp.float32), w2f.astype(jnp.float32),
            waf.astype(jnp.float32), bias_pack)


def _choose_tile(batch, block_m):
    """Pick the batch tile TM and grid length without any wrapper-side padding."""
    if batch <= 512:
        # Single block; block dims equal full array dims, so any batch is legal.
        return batch, 1
    # Tiled path: TM must be a multiple of 128 (output lane dim / ragged blocks)
    # and of 8 (row dim). Keep >= 2 grid steps so the "parallel" axis can shard
    # across both TensorCores on v7x.
    bm = max(128, (block_m // 128) * 128)
    tm = min(bm, _round_up(pl.cdiv(batch, 2), 128))
    return tm, pl.cdiv(batch, tm)


def actor_forward(obs, available_actions, kernel_params, *, block_m=1024):
    """Actor forward (deterministic=True).

    Returns (actions (B,1) int32, action_log_probs (B,1) float32).
    block_m=1024 keeps well under v5e's 16 MiB scoped-VMEM default; raise
    vmem_limit_bytes via CompilerParams only if you push block_m >= 4096.
    """
    w1f, w2f, waf, bias_pack = kernel_params
    B, obs_dim = obs.shape
    hidden = w1f.shape[1]
    act_dim = waf.shape[1]

    tm, grid_len = _choose_tile(B, block_m)

    kernel = _make_actor_kernel(obs_dim, hidden, act_dim)
    out = pl.pallas_call(
        kernel,
        out_shape=jax.ShapeDtypeStruct((2, B), jnp.float32),
        grid_spec=pltpu.PrefetchScalarGridSpec(
            num_scalar_prefetch=0,
            grid=(grid_len,),
            in_specs=[
                pl.BlockSpec((tm, obs_dim), lambda i: (i, 0)),
                pl.BlockSpec((tm, act_dim), lambda i: (i, 0)),
                # weights/biases stay VMEM-resident across the whole grid
                pl.BlockSpec(w1f.shape, lambda i: (0, 0)),
                pl.BlockSpec(w2f.shape, lambda i: (0, 0)),
                pl.BlockSpec(waf.shape, lambda i: (0, 0)),
                pl.BlockSpec(bias_pack.shape, lambda i: (0, 0)),
            ],
            # lane-dense output: row 0 = log_prob, row 1 = action
            out_specs=pl.BlockSpec((2, tm), lambda i: (0, i)),
        ),
        compiler_params=pltpu.CompilerParams(
            dimension_semantics=("parallel",)),
    )(obs, available_actions, w1f, w2f, waf, bias_pack)

    actions = out[1, :].astype(jnp.int32).reshape(B, 1)
    log_probs = out[0, :].reshape(B, 1)
    return actions, log_probs


def init_params(key, obs_dim, hidden, act_dim):
    """Deterministic synthetic parameter init (non-trivial LN affines to exercise the fold)."""
    ks = jax.random.split(key, 12)
    f32 = jnp.float32
    ln0_g = 1.0 + 0.1 * jax.random.normal(ks[0], (1, obs_dim), f32)
    ln0_b = 0.1 * jax.random.normal(ks[1], (1, obs_dim), f32)
    w1 = jax.random.normal(ks[2], (obs_dim, hidden), f32) / jnp.sqrt(obs_dim)
    b1 = 0.1 * jax.random.normal(ks[3], (1, hidden), f32)
    ln1_g = 1.0 + 0.1 * jax.random.normal(ks[4], (1, hidden), f32)
    ln1_b = 0.1 * jax.random.normal(ks[5], (1, hidden), f32)
    w2 = jax.random.normal(ks[6], (hidden, hidden), f32) / jnp.sqrt(hidden)
    b2 = 0.1 * jax.random.normal(ks[7], (1, hidden), f32)
    ln2_g = 1.0 + 0.1 * jax.random.normal(ks[8], (1, hidden), f32)
    ln2_b = 0.1 * jax.random.normal(ks[9], (1, hidden), f32)
    wa = 0.01 * jax.random.normal(ks[10], (hidden, act_dim), f32)   # gain=0.01 on act layer
    ba = jnp.zeros((1, act_dim), f32)
    return (ln0_g, ln0_b, w1, b1, ln1_g, ln1_b, w2, b2, ln2_g, ln2_b, wa, ba)


def reference_forward(obs, avail, params):
    (ln0_g, ln0_b, w1, b1, ln1_g, ln1_b, w2, b2, ln2_g, ln2_b, wa, ba) = params

    def ln(x, g, b):
        mu = jnp.mean(x, axis=-1, keepdims=True)
        var = jnp.mean((x - mu) ** 2, axis=-1, keepdims=True)
        return (x - mu) / jnp.sqrt(var + LN_EPS) * g + b

    x = ln(obs, ln0_g, ln0_b)
    h = ln(jnp.maximum(x @ w1 + b1, 0.0), ln1_g, ln1_b)
    h = ln(jnp.maximum(h @ w2 + b2, 0.0), ln2_g, ln2_b)
    logits = h @ wa + ba
    logits = jnp.where(avail > 0.5, logits, NEG_INF)
    act = jnp.argmax(logits, axis=-1, keepdims=True).astype(jnp.int32)
    logp = jnp.take_along_axis(jax.nn.log_softmax(logits, axis=-1), act, axis=-1)
    return act, logp, logits


def _run_case(key, B, obs_dim, act_dim, params, kparams, block_m=1024):
    k_obs, k_avail = jax.random.split(key)
    obs = jax.random.normal(k_obs, (B, obs_dim), jnp.float32)
    avail = (jax.random.uniform(k_avail, (B, act_dim)) > 0.3).astype(jnp.float32)
    avail = avail.at[:, 0].set(1.0)           # always keep at least one valid action

    actions, log_probs = actor_forward(obs, avail, kparams, block_m=block_m)
    actions = jax.block_until_ready(actions)
    log_probs = jax.block_until_ready(log_probs)

    ref_act, ref_logp, ref_logits = reference_forward(obs, avail, params)
    assert actions.shape == (B, 1) and log_probs.shape == (B, 1)
    # argmax check tolerant to float near-ties (act-layer gain=0.01 -> tight logits)
    ref_max = jnp.max(ref_logits, axis=-1, keepdims=True)
    chosen = jnp.take_along_axis(ref_logits, actions, axis=-1)
    assert bool(jnp.all(chosen >= ref_max - 1e-4)), (actions, ref_act)
    assert jnp.allclose(log_probs, ref_logp, atol=3e-5, rtol=3e-5), (log_probs, ref_logp)


if __name__ == "__main__":
    OBS_DIM, HIDDEN, ACT_DIM = 24, 32, 6

    key = jax.random.PRNGKey(0)
    k_case1, k_case2, k_case3, k_par = jax.random.split(key, 4)

    params = init_params(k_par, OBS_DIM, HIDDEN, ACT_DIM)
    kparams = prepare_params(params)          # fold LN affines + pack biases (once)

    # masks are an Actor.forward arg but unused by the non-recurrent MLP path.
    masks = jnp.ones((8, 1), jnp.float32)  # noqa: F841  (kept for API parity)

    # small batch (single block), mid batch (single block), large batch exercising
    # the multi-block "parallel" grid with an unpadded ragged last block.
    _run_case(k_case1, 8, OBS_DIM, ACT_DIM, params, kparams)
    _run_case(k_case2, 272, OBS_DIM, ACT_DIM, params, kparams)
    _run_case(k_case3, 1300, OBS_DIM, ACT_DIM, params, kparams)

    # TODO(synk): stochastic sampling path (deterministic=False) needs an in-kernel PRNG
    # (pltpu.prng_seed + Gumbel trick); only the deterministic/mode path is implemented.
    print("KERNEL_OK")
</pallas_src>

<mosaic_0001>
module attributes {stable_mosaic.version = 11 : i64} {
  func.func @kernel(%arg0: i32, %arg1: memref<8x24xf32, #tpu.memory_space<vmem>>, %arg2: memref<8x6xf32, #tpu.memory_space<vmem>>, %arg3: memref<24x32xf32, #tpu.memory_space<vmem>>, %arg4: memref<32x32xf32, #tpu.memory_space<vmem>>, %arg5: memref<32x6xf32, #tpu.memory_space<vmem>>, %arg6: memref<3x32xf32, #tpu.memory_space<vmem>>, %arg7: memref<2x8xf32, #tpu.memory_space<vmem>>) attributes {dimension_semantics = [#tpu.dimension_semantics<parallel>], iteration_bounds = array<i64: 1>, scalar_prefetch = 0 : i64, scratch_operands = 0 : i64, tpu.core_type = #tpu.core_type<tc>, window_params = [{transform_indices = @transform_0, window_bounds = array<i64: 8, 24>}, {transform_indices = @transform_1, window_bounds = array<i64: 8, 6>}, {pipeline_mode = #tpu.pipeline_mode<synchronous>, transform_indices = @transform_2, window_bounds = array<i64: 24, 32>}, {pipeline_mode = #tpu.pipeline_mode<synchronous>, transform_indices = @transform_3, window_bounds = array<i64: 32, 32>}, {pipeline_mode = #tpu.pipeline_mode<synchronous>, transform_indices = @transform_4, window_bounds = array<i64: 32, 6>}, {pipeline_mode = #tpu.pipeline_mode<synchronous>, transform_indices = @transform_5, window_bounds = array<i64: 3, 32>}, {transform_indices = @transform_6, window_bounds = array<i64: 2, 8>}]} {
    %cst = arith.constant 1.000000e+00 : f32
    %0 = vector.broadcast %cst : f32 to vector<24x1xf32>
    %cst_0 = arith.constant 1.000000e+00 : f32
    %1 = vector.broadcast %cst_0 : f32 to vector<32x1xf32>
    %cst_1 = arith.constant 1.000000e+00 : f32
    %2 = vector.broadcast %cst_1 : f32 to vector<6x1xf32>
    %c0 = arith.constant 0 : index
    %c0_2 = arith.constant 0 : index
    %3 = vector.load %arg6[%c0, %c0_2] : memref<3x32xf32, #tpu.memory_space<vmem>>, vector<3x32xf32>
    %4 = vector.extract_strided_slice %3 {offsets = [0, 0], sizes = [1, 32], strides = [1, 1]} : vector<3x32xf32> to vector<1x32xf32>
    %5 = vector.extract_strided_slice %3 {offsets = [1, 0], sizes = [1, 32], strides = [1, 1]} : vector<3x32xf32> to vector<1x32xf32>
    %6 = vector.extract_strided_slice %3 {offsets = [2, 0], sizes = [1, 6], strides = [1, 1]} : vector<3x32xf32> to vector<1x6xf32>
    %c0_3 = arith.constant 0 : index
    %c0_4 = arith.constant 0 : index
    %7 = vector.load %arg1[%c0_3, %c0_4] : memref<8x24xf32, #tpu.memory_space<vmem>>, vector<8x24xf32>
    %cst_5 = arith.constant dense<0.000000e+00> : vector<8x1xf32>
    %8 = tpu.matmul %7, %0, %cst_5 {dimension_numbers = #tpu.dot_dimension_numbers<[1], [0], [0], [1], [0, 0, 1, 1], [], []>} : vector<8x24xf32>, vector<24x1xf32>, vector<8x1xf32> -> vector<8x1xf32>
    %cst_6 = arith.constant 0.0416666679 : f32
    %9 = vector.broadcast %cst_6 : f32 to vector<8x1xf32>
    %10 = arith.mulf %8, %9 : vector<8x1xf32>
    %11 = vector.broadcast %10 : vector<8x1xf32> to vector<8x24xf32>
    %12 = arith.subf %7, %11 : vector<8x24xf32>
    %13 = arith.mulf %12, %12 : vector<8x24xf32>
    %cst_7 = arith.constant dense<0.000000e+00> : vector<8x1xf32>
    %14 = tpu.matmul %13, %0, %cst_7 {dimension_numbers = #tpu.dot_dimension_numbers<[1], [0], [0], [1], [0, 0, 1, 1], [], []>} : vector<8x24xf32>, vector<24x1xf32>, vector<8x1xf32> -> vector<8x1xf32>
    %cst_8 = arith.constant 0.0416666679 : f32
    %15 = vector.broadcast %cst_8 : f32 to vector<8x1xf32>
    %16 = arith.mulf %14, %15 : vector<8x1xf32>
    %cst_9 = arith.constant 9.99999974E-6 : f32
    %17 = vector.broadcast %cst_9 : f32 to vector<8x1xf32>
    %18 = arith.addf %16, %17 : vector<8x1xf32>
    %19 = math.rsqrt %18 : vector<8x1xf32>
    %20 = vector.broadcast %19 : vector<8x1xf32> to vector<8x24xf32>
    %21 = arith.mulf %12, %20 : vector<8x24xf32>
    %c0_10 = arith.constant 0 : index
    %c0_11 = arith.constant 0 : index
    %22 = vector.load %arg3[%c0_10, %c0_11] : memref<24x32xf32, #tpu.memory_space<vmem>>, vector<24x32xf32>
    %cst_12 = arith.constant dense<0.000000e+00> : vector<8x32xf32>
    %23 = tpu.matmul %21, %22, %cst_12 {dimension_numbers = #tpu.dot_dimension_numbers<[1], [0], [0], [1], [0, 0, 1, 1], [], []>} : vector<8x24xf32>, vector<24x32xf32>, vector<8x32xf32> -> vector<8x32xf32>
    %24 = vector.broadcast %4 : vector<1x32xf32> to vector<8x32xf32>
    %25 = arith.addf %23, %24 : vector<8x32xf32>
    %cst_13 = arith.constant 0.000000e+00 : f32
    %26 = vector.broadcast %cst_13 : f32 to vector<8x32xf32>
    %27 = arith.maximumf %25, %26 : vector<8x32xf32>
    %cst_14 = arith.constant dense<0.000000e+00> : vector<8x1xf32>
    %28 = tpu.matmul %27, %1, %cst_14 {dimension_numbers = #tpu.dot_dimension_numbers<[1], [0], [0], [1], [0, 0, 1, 1], [], []>} : vector<8x32xf32>, vector<32x1xf32>, vector<8x1xf32> -> vector<8x1xf32>
    %cst_15 = arith.constant 3.125000e-02 : f32
    %29 = vector.broadcast %cst_15 : f32 to vector<8x1xf32>
    %30 = arith.mulf %28, %29 : vector<8x1xf32>
    %31 = vector.broadcast %30 : vector<8x1xf32> to vector<8x32xf32>
    %32 = arith.subf %27, %31 : vector<8x32xf32>
    %33 = arith.mulf %32, %32 : vector<8x32xf32>
    %cst_16 = arith.constant dense<0.000000e+00> : vector<8x1xf32>
    %34 = tpu.matmul %33, %1, %cst_16 {dimension_numbers = #tpu.dot_dimension_numbers<[1], [0], [0], [1], [0, 0, 1, 1], [], []>} : vector<8x32xf32>, vector<32x1xf32>, vector<8x1xf32> -> vector<8x1xf32>
    %cst_17 = arith.constant 3.125000e-02 : f32
    %35 = vector.broadcast %cst_17 : f32 to vector<8x1xf32>
    %36 = arith.mulf %34, %35 : vector<8x1xf32>
    %cst_18 = arith.constant 9.99999974E-6 : f32
    %37 = vector.broadcast %cst_18 : f32 to vector<8x1xf32>
    %38 = arith.addf %36, %37 : vector<8x1xf32>
    %39 = math.rsqrt %38 : vector<8x1xf32>
    %40 = vector.broadcast %39 : vector<8x1xf32> to vector<8x32xf32>
    %41 = arith.mulf %32, %40 : vector<8x32xf32>
    %c0_19 = arith.constant 0 : index
    %c0_20 = arith.constant 0 : index
    %42 = vector.load %arg4[%c0_19, %c0_20] : memref<32x32xf32, #tpu.memory_space<vmem>>, vector<32x32xf32>
    %cst_21 = arith.constant dense<0.000000e+00> : vector<8x32xf32>
    %43 = tpu.matmul %41, %42, %cst_21 {dimension_numbers = #tpu.dot_dimension_numbers<[1], [0], [0], [1], [0, 0, 1, 1], [], []>} : vector<8x32xf32>, vector<32x32xf32>, vector<8x32xf32> -> vector<8x32xf32>
    %44 = vector.broadcast %5 : vector<1x32xf32> to vector<8x32xf32>
    %45 = arith.addf %43, %44 : vector<8x32xf32>
    %cst_22 = arith.constant 0.000000e+00 : f32
    %46 = vector.broadcast %cst_22 : f32 to vector<8x32xf32>
    %47 = arith.maximumf %45, %46 : vector<8x32xf32>
    %cst_23 = arith.constant dense<0.000000e+00> : vector<8x1xf32>
    %48 = tpu.matmul %47, %1, %cst_23 {dimension_numbers = #tpu.dot_dimension_numbers<[1], [0], [0], [1], [0, 0, 1, 1], [], []>} : vector<8x32xf32>, vector<32x1xf32>, vector<8x1xf32> -> vector<8x1xf32>
    %cst_24 = arith.constant 3.125000e-02 : f32
    %49 = vector.broadcast %cst_24 : f32 to vector<8x1xf32>
    %50 = arith.mulf %48, %49 : vector<8x1xf32>
    %51 = vector.broadcast %50 : vector<8x1xf32> to vector<8x32xf32>
    %52 = arith.subf %47, %51 : vector<8x32xf32>
    %53 = arith.mulf %52, %52 : vector<8x32xf32>
    %cst_25 = arith.constant dense<0.000000e+00> : vector<8x1xf32>
    %54 = tpu.matmul %53, %1, %cst_25 {dimension_numbers = #tpu.dot_dimension_numbers<[1], [0], [0], [1], [0, 0, 1, 1], [], []>} : vector<8x32xf32>, vector<32x1xf32>, vector<8x1xf32> -> vector<8x1xf32>
    %cst_26 = arith.constant 3.125000e-02 : f32
    %55 = vector.broadcast %cst_26 : f32 to vector<8x1xf32>
    %56 = arith.mulf %54, %55 : vector<8x1xf32>
    %cst_27 = arith.constant 9.99999974E-6 : f32
    %57 = vector.broadcast %cst_27 : f32 to vector<8x1xf32>
    %58 = arith.addf %56, %57 : vector<8x1xf32>
    %59 = math.rsqrt %58 : vector<8x1xf32>
    %60 = vector.broadcast %59 : vector<8x1xf32> to vector<8x32xf32>
    %61 = arith.mulf %52, %60 : vector<8x32xf32>
    %c0_28 = arith.constant 0 : index
    %c0_29 = arith.constant 0 : index
    %62 = vector.load %arg5[%c0_28, %c0_29] : memref<32x6xf32, #tpu.memory_space<vmem>>, vector<32x6xf32>
    %cst_30 = arith.constant dense<0.000000e+00> : vector<8x6xf32>
    %63 = tpu.matmul %61, %62, %cst_30 {dimension_numbers = #tpu.dot_dimension_numbers<[1], [0], [0], [1], [0, 0, 1, 1], [], []>} : vector<8x32xf32>, vector<32x6xf32>, vector<8x6xf32> -> vector<8x6xf32>
    %64 = vector.broadcast %6 : vector<1x6xf32> to vector<8x6xf32>
    %65 = arith.addf %63, %64 : vector<8x6xf32>
    %c0_31 = arith.constant 0 : index
    %c0_32 = arith.constant 0 : index
    %66 = vector.load %arg2[%c0_31, %c0_32] : memref<8x6xf32, #tpu.memory_space<vmem>>, vector<8x6xf32>
    %cst_33 = arith.constant 5.000000e-01 : f32
    %67 = vector.broadcast %cst_33 : f32 to vector<8x6xf32>
    %68 = arith.cmpf ogt, %66, %67 : vector<8x6xf32>
    %cst_34 = arith.constant -1.000000e+10 : f32
    %69 = vector.broadcast %cst_34 : f32 to vector<8x6xf32>
    %70 = arith.select %68, %65, %69 : vector<8x6xi1>, vector<8x6xf32>
    %cst_35 = arith.constant dense<0xFF800000> : vector<8xf32>
    %71 = vector.multi_reduction <maximumf>, %70, %cst_35 [1] : vector<8x6xf32> to vector<8xf32>
    %72 = vector.shape_cast %71 : vector<8xf32> to vector<8x1xf32>
    %73 = tpu.iota {dimensions = array<i32: 1>} : vector<8x6xi32>
    %74 = vector.broadcast %72 : vector<8x1xf32> to vector<8x6xf32>
    %75 = arith.cmpf oeq, %70, %74 : vector<8x6xf32>
    %c6_i32 = arith.constant 6 : i32
    %76 = vector.broadcast %c6_i32 : i32 to vector<8x6xi32>
    %77 = arith.select %75, %73, %76 : vector<8x6xi1>, vector<8x6xi32>
    %cst_36 = arith.constant dense<2147483647> : vector<8xi32>
    %78 = vector.multi_reduction <minsi>, %77, %cst_36 [1] : vector<8x6xi32> to vector<8xi32>
    %79 = vector.shape_cast %78 : vector<8xi32> to vector<8x1xi32>
    %80 = vector.broadcast %72 : vector<8x1xf32> to vector<8x6xf32>
    %81 = arith.subf %70, %80 : vector<8x6xf32>
    %82 = math.exp %81 : vector<8x6xf32>
    %cst_37 = arith.constant dense<0.000000e+00> : vector<8x1xf32>
    %83 = tpu.matmul %82, %2, %cst_37 {dimension_numbers = #tpu.dot_dimension_numbers<[1], [0], [0], [1], [0, 0, 1, 1], [], []>} : vector<8x6xf32>, vector<6x1xf32>, vector<8x1xf32> -> vector<8x1xf32>
    %84 = math.log %83 : vector<8x1xf32>
    %cst_38 = arith.constant 0.000000e+00 : f32
    %85 = vector.broadcast %cst_38 : f32 to vector<8x1xf32>
    %86 = arith.subf %85, %84 : vector<8x1xf32>
    %87 = arith.sitofp %79 : vector<8x1xi32> to vector<8x1xf32>
    %88 = tpu.concatenate %86, %87 in 1 : vector<8x1xf32>, vector<8x1xf32> -> vector<8x2xf32>
    %89 = tpu.transpose %88, [1, 0] : vector<8x2xf32> -> vector<2x8xf32>
    %c0_39 = arith.constant 0 : index
    %c0_40 = arith.constant 0 : index
    %90 = vector.load %arg7[%c0_39, %c0_40] : memref<2x8xf32, #tpu.memory_space<vmem>>, vector<2x8xf32>
    tpu.vector_store %arg7[%c0_39, %c0_40], %89 {strides = array<i32>} : memref<2x8xf32, #tpu.memory_space<vmem>>, vector<2x8xf32>,
    return
  }
  func.func @transform_0(%arg0: i32) -> (i32, i32) {
    %c0_i32 = arith.constant 0 : i32
    %c0_i32_0 = arith.constant 0 : i32
    return %arg0, %c0_i32 : i32, i32
  }
  func.func @transform_1(%arg0: i32) -> (i32, i32) {
    %c0_i32 = arith.constant 0 : i32
    %c0_i32_0 = arith.constant 0 : i32
    return %arg0, %c0_i32 : i32, i32
  }
  func.func @transform_2(%arg0: i32) -> (i32, i32) {
    %c0_i32 = arith.constant 0 : i32
    %c0_i32_0 = arith.constant 0 : i32
    %c0_i32_1 = arith.constant 0 : i32
    return %c0_i32, %c0_i32_0 : i32, i32
  }
  func.func @transform_3(%arg0: i32) -> (i32, i32) {
    %c0_i32 = arith.constant 0 : i32
    %c0_i32_0 = arith.constant 0 : i32
    %c0_i32_1 = arith.constant 0 : i32
    return %c0_i32, %c0_i32_0 : i32, i32
  }
  func.func @transform_4(%arg0: i32) -> (i32, i32) {
    %c0_i32 = arith.constant 0 : i32
    %c0_i32_0 = arith.constant 0 : i32
    %c0_i32_1 = arith.constant 0 : i32
    return %c0_i32, %c0_i32_0 : i32, i32
  }
  func.func @transform_5(%arg0: i32) -> (i32, i32) {
    %c0_i32 = arith.constant 0 : i32
    %c0_i32_0 = arith.constant 0 : i32
    %c0_i32_1 = arith.constant 0 : i32
    return %c0_i32, %c0_i32_0 : i32, i32
  }
  func.func @transform_6(%arg0: i32) -> (i32, i32) {
    %c0_i32 = arith.constant 0 : i32
    %c0_i32_0 = arith.constant 0 : i32
    return %c0_i32, %arg0 : i32, i32
  }
}

</mosaic_0001>

<llo_original>
// kernel: tpu_custom_call.1
$region0: #{tpu_custom_call.1}
  #allocation0 [shape = 'u32[]', space=smem, size = 0x4, offset = 0x4, fixed_abs, tag = 'smem constant byte address 0x4 - core index']
  #allocation1 [shape = 'u32[144,128]{1,0:T(1,128)}', space=vmem, size = 0x12000, scoped, tag = 'internal scratch']
  %s0 = inlined_call_operand.vmem [shape: f32[8,24], index: 0, kind: input, shape index: {}]
  %s1 = inlined_call_operand.hbm [shape: f32[8,6], index: 1, kind: input, shape index: {}]
  %s2 = inlined_call_operand.hbm [shape: f32[24,32], index: 2, kind: input, shape index: {}]
  %s3 = inlined_call_operand.vmem [shape: f32[32,32], index: 3, kind: input, shape index: {}]
  %s4 = inlined_call_operand.vmem [shape: f32[32,6], index: 4, kind: input, shape index: {}]
  %s5 = inlined_call_operand.vmem [shape: f32[3,32], index: 5, kind: input, shape index: {}]
  %s6 = inlined_call_operand.hbm [shape: f32[2,8], index: 6, kind: output, shape index: {}]
  %s7 = sld [smem:[#allocation0]]
  $region42: #{tpu_custom_call.1} parent=0
    _
  %s9 = ssub.s32 1, %s7
  %s10 = scalar_select 0, %s9, %s7
  $region1: #{tpu_custom_call.1} parent=0
    #allocation2 [shape = 'u8[4096]{0}', space=vmem, size = 0x1000, scoped, tag = 'input window, operand 1, single buffered']
    #allocation3 [shape = 's32[1]{0}', space=sflag, size = 0x4, scoped, tag = 'scoped memory for tpu_custom_call.1']
    #allocation4 [shape = 's32[1]{0}', space=sflag, size = 0x4, scoped, tag = 'scoped memory for tpu_custom_call.1']
    #allocation5 [shape = 'u8[12288]{0}', space=vmem, size = 0x3000, scoped, tag = 'input window, operand 2, single buffered']
    #allocation6 [shape = 's32[1]{0}', space=sflag, size = 0x4, scoped, tag = 'scoped memory for tpu_custom_call.1']
    #allocation7 [shape = 'u8[1024]{0}', space=vmem, size = 0x400, scoped, tag = 'output window, operand 0, single buffered']
    %11 = vsyncpa [#allocation3], 0
    %12 = vsyncpa [#allocation6], 0
    %13 = vsyncpa [#allocation4], 0
    // Predicated region
    $region2: #{tpu_custom_call.1} parent=1 // pred_check
      _
    $region3: #{tpu_custom_call.1} parent=1 // pred_check_branch
      %15 = sbr.rel (0) target = $region5
    $region4: #{tpu_custom_call.1} parent=1 // pred_region
      _
    $region5: #{tpu_custom_call.1} parent=1 // pred_fallthru
      _
    // Predicated region
    $region6: #{tpu_custom_call.1} parent=1 // pred_check
      _
    $region7: #{tpu_custom_call.1} parent=1 // pred_check_branch
      %17 = sbr.rel (0) target = $region9
    $region8: #{tpu_custom_call.1} parent=1 // pred_region
      %s19 = ssub.s32 128, 128
      %20 = vsyncadd [#allocation3], %s19
      %s22 = sshll.u32 [#allocation2], 4
      %s23 = int_to_ptr.vmem [resolvable:$true] %s22
      %25 = dma.hbm_to_vmem [thread:$0]  %s1, 128, %s23, [#allocation3]
    $region9: #{tpu_custom_call.1} parent=1 // pred_fallthru
      _
    // Predicated region
    $region10: #{tpu_custom_call.1} parent=1 // pred_check
      _
    $region11: #{tpu_custom_call.1} parent=1 // pred_check_branch
      %27 = sbr.rel (0) target = $region13
    $region12: #{tpu_custom_call.1} parent=1 // pred_region
      %s29 = ssub.s32 384, 384
      %30 = vsyncadd [#allocation6], %s29
      %s31 = sshll.u32 [#allocation5], 4
      %s32 = int_to_ptr.vmem [resolvable:$true] %s31
      %37 = dma.hbm_to_vmem [thread:$0]  %s2, 384, %s32, [#allocation6], 128, 128, 8
    $region13: #{tpu_custom_call.1} parent=1 // pred_fallthru
      _
    // Predicated region
    $region14: #{tpu_custom_call.1} parent=1 // pred_check
      _
    $region15: #{tpu_custom_call.1} parent=1 // pred_check_branch
      %39 = sbr.rel (0) target = $region17
    $region16: #{tpu_custom_call.1} parent=1 // pred_region
      _
    $region17: #{tpu_custom_call.1} parent=1 // pred_fallthru
      _
    // Predicated region
    $region18: #{tpu_custom_call.1} parent=1 // pred_check
      _
    $region19: #{tpu_custom_call.1} parent=1 // pred_check_branch
      %41 = sbr.rel (0) target = $region21
    $region20: #{tpu_custom_call.1} parent=1 // pred_region
      _
    $region21: #{tpu_custom_call.1} parent=1 // pred_fallthru
      _
    // Predicated region
    $region22: #{tpu_custom_call.1} parent=1 // pred_check
      _
    $region23: #{tpu_custom_call.1} parent=1 // pred_check_branch
      %43 = sbr.rel (0) target = $region25
    $region24: #{tpu_custom_call.1} parent=1 // pred_region
      _
    $region25: #{tpu_custom_call.1} parent=1 // pred_fallthru
      _
    // Predicated region
    $region26: #{tpu_custom_call.1} parent=1 // pred_check
      _
    $region27: #{tpu_custom_call.1} parent=1 // pred_check_branch
      %45 = sbr.rel (0) target = $region29
    $region28: #{tpu_custom_call.1} parent=1 // pred_region
      %46 = dma.done [#allocation3], 128
    $region29: #{tpu_custom_call.1} parent=1 // pred_fallthru
      _
    // Predicated region
    $region30: #{tpu_custom_call.1} parent=1 // pred_check
      _
    $region31: #{tpu_custom_call.1} parent=1 // pred_check_branch
      %48 = sbr.rel (0) target = $region33
    $region32: #{tpu_custom_call.1} parent=1 // pred_region
      %49 = dma.done [#allocation6], 384
    $region33: #{tpu_custom_call.1} parent=1 // pred_fallthru
      _
    %v50 = vld [vmem:[%s5] sm:$0x7]
    %v51 = vld [vmem:[%s0] sm:$0xff]
    %vm52 = vcmask 195584
    %v54 = vsel %vm52, %v51, 0
    %56 = vmatprep.subr.mxu0 0.0
    %57 = vmatpush1.msra.mxu0 0.0
    %58 = vmatprep.subr.mxu0 0.0
    %59 = vmatpush1.msra.mxu0 0.0
    %60 = vmatprep.subr.mxu0 0.0
    %61 = vmatpush1.msra.mxu0 0.0
    %62 = vmatprep.subr.mxu0 0.0
    %63 = vmatpush1.msra.mxu0 0.0
    %64 = vmatprep.subr.mxu0 0.0
    %65 = vmatpush1.msra.mxu0 0.0
    %66 = vmatprep.subr.mxu0 0.0
    %67 = vmatpush1.msra.mxu0 0.0
    %68 = vmatprep.subr.mxu0 0.0
    %69 = vmatpush1.msra.mxu0 0.0
    %70 = vmatprep.subr.mxu0 0.0
    %71 = vmatpush1.msra.mxu0 0.0
    %72 = vmatprep.subr.mxu0 0.0
    %73 = vmatpush1.msra.mxu0 0.0
    %74 = vmatprep.subr.mxu0 0.0
    %75 = vmatpush1.msra.mxu0 0.0
    %76 = vmatprep.subr.mxu0 0.0
    %77 = vmatpush1.msra.mxu0 0.0
    %78 = vmatprep.subr.mxu0 0.0
    %79 = vmatpush1.msra.mxu0 0.0
    %80 = vmatprep.subr.mxu0 0.0
    %81 = vmatpush1.msra.mxu0 0.0
    %82 = vmatprep.subr.mxu0 0.0
    %83 = vmatpush1.msra.mxu0 1.0
    %84 = vmatprep.subr.mxu0 0.0
    %85 = vmatpush1.msra.mxu0 1.0
    %86 = vmatprep.subr.mxu0 0.0
    %87 = vmatpush1.msra.mxu0 1.0
    %88 = vmatprep.subr.mxu0 0.0
    %89 = vmatpush2.msra.mxu0 0.0
    %90 = vmatprep.subr.mxu0 0.0
    %91 = vmatpush2.msra.mxu0 0.0
    %92 = vmatprep.subr.mxu0 0.0
    %93 = vmatpush2.msra.mxu0 0.0
    %94 = vmatprep.subr.mxu0 0.0
    %95 = vmatpush2.msra.mxu0 0.0
    %96 = vmatprep.subr.mxu0 0.0
    %97 = vmatpush2.msra.mxu0 0.0
    %98 = vmatprep.subr.mxu0 0.0
    %99 = vmatpush2.msra.mxu0 0.0
    %100 = vmatprep.subr.mxu0 0.0
    %101 = vmatpush2.msra.mxu0 0.0
    %102 = vmatprep.subr.mxu0 0.0
    %103 = vmatpush2.msra.mxu0 0.0
    %104 = vmatprep.subr.mxu0 0.0
    %105 = vmatpush2.msra.mxu0 0.0
    %106 = vmatprep.subr.mxu0 0.0
    %107 = vmatpush2.msra.mxu0 0.0
    %108 = vmatprep.subr.mxu0 0.0
    %109 = vmatpush2.msra.mxu0 0.0
    %110 = vmatprep.subr.mxu0 0.0
    %111 = vmatpush2.msra.mxu0 0.0
    %112 = vmatprep.subr.mxu0 0.0
    %113 = vmatpush2.msra.mxu0 0.0
    %114 = vmatprep.subr.mxu0 0.0
    %115 = vmatpush2.msra.mxu0 0.0
    %116 = vmatprep.subr.mxu0 0.0
    %117 = vmatpush2.msra.mxu0 0.0
    %118 = vmatprep.subr.mxu0 0.0
    %119 = vmatpush2.msra.mxu0 0.0
    %120 = vmatprep.mubr.f32.mxu0 0.0
    %121 = vmatmul.mubr.f32.gmra.mxu0 %v54
    %v122 = vpop.f32.mrf.mxu0
    %v123 = vadd.f32 0.0, %v122
    %v124 = vpop.f32.mrf.mxu0
    %125 = vdwg.mxu0
    %v126 = vmul.f32 %v123, 0.041666668
    %128 = vset.pattern.permute.xlu0 0
    %129 = vperm.xlu0 %128, %v126
    %v130 = vpop.permute.xlu0 %129
    %v132 = vsub.f32 %v51, %v130
    %v133 = vmul.f32 %v132, %v132
    %v135 = vsel %vm52, %v133, 0
    %137 = vmatprep.subr.mxu0 0.0
    %138 = vmatpush1.msra.mxu0 0.0
    %139 = vmatprep.subr.mxu0 0.0
    %140 = vmatpush1.msra.mxu0 0.0
    %141 = vmatprep.subr.mxu0 0.0
    %142 = vmatpush1.msra.mxu0 0.0
    %143 = vmatprep.subr.mxu0 0.0
    %144 = vmatpush1.msra.mxu0 0.0
    %145 = vmatprep.subr.mxu0 0.0
    %146 = vmatpush1.msra.mxu0 0.0
    %147 = vmatprep.subr.mxu0 0.0
    %148 = vmatpush1.msra.mxu0 0.0
    %149 = vmatprep.subr.mxu0 0.0
    %150 = vmatpush1.msra.mxu0 0.0
    %151 = vmatprep.subr.mxu0 0.0
    %152 = vmatpush1.msra.mxu0 0.0
    %153 = vmatprep.subr.mxu0 0.0
    %154 = vmatpush1.msra.mxu0 0.0
    %155 = vmatprep.subr.mxu0 0.0
    %156 = vmatpush1.msra.mxu0 0.0
    %157 = vmatprep.subr.mxu0 0.0
    %158 = vmatpush1.msra.mxu0 0.0
    %159 = vmatprep.subr.mxu0 0.0
    %160 = vmatpush1.msra.mxu0 0.0
    %161 = vmatprep.subr.mxu0 0.0
    %162 = vmatpush1.msra.mxu0 0.0
    %163 = vmatprep.subr.mxu0 0.0
    %164 = vmatpush1.msra.mxu0 1.0
    %165 = vmatprep.subr.mxu0 0.0
    %166 = vmatpush1.msra.mxu0 1.0
    %167 = vmatprep.subr.mxu0 0.0
    %168 = vmatpush1.msra.mxu0 1.0
    %169 = vmatprep.subr.mxu0 0.0
    %170 = vmatpush2.msra.mxu0 0.0
    %171 = vmatprep.subr.mxu0 0.0
    %172 = vmatpush2.msra.mxu0 0.0
    %173 = vmatprep.subr.mxu0 0.0
    %174 = vmatpush2.msra.mxu0 0.0
    %175 = vmatprep.subr.mxu0 0.0
    %176 = vmatpush2.msra.mxu0 0.0
    %177 = vmatprep.subr.mxu0 0.0
    %178 = vmatpush2.msra.mxu0 0.0
    %179 = vmatprep.subr.mxu0 0.0
    %180 = vmatpush2.msra.mxu0 0.0
    %181 = vmatprep.subr.mxu0 0.0
    %182 = vmatpush2.msra.mxu0 0.0
    %183 = vmatprep.subr.mxu0 0.0
    %184 = vmatpush2.msra.mxu0 0.0
    %185 = vmatprep.subr.mxu0 0.0
    %186 = vmatpush2.msra.mxu0 0.0
    %187 = vmatprep.subr.mxu0 0.0
    %188 = vmatpush2.msra.mxu0 0.0
    %189 = vmatprep.subr.mxu0 0.0
    %190 = vmatpush2.msra.mxu0 0.0
    %191 = vmatprep.subr.mxu0 0.0
    %192 = vmatpush2.msra.mxu0 0.0
    %193 = vmatprep.subr.mxu0 0.0
    %194 = vmatpush2.msra.mxu0 0.0
    %195 = vmatprep.subr.mxu0 0.0
    %196 = vmatpush2.msra.mxu0 0.0
    %197 = vmatprep.subr.mxu0 0.0
    %198 = vmatpush2.msra.mxu0 0.0
    %199 = vmatprep.subr.mxu0 0.0
    %200 = vmatpush2.msra.mxu0 0.0
    %201 = vmatprep.mubr.f32.mxu0 0.0
    %202 = vmatmul.mubr.f32.gmra.mxu0 %v135
    %v203 = vpop.f32.mrf.mxu0
    %v204 = vadd.f32 0.0, %v203
    %v205 = vpop.f32.mrf.mxu0
    %206 = vdwg.mxu0
    %v207 = vmul.f32 %v204, 0.041666668
    %v208 = vadd.f32 %v207, 1e-05
    %v209 = vrsqrt.pop %v208
    %211 = vset.pattern.permute.xlu0 0
    %212 = vperm.xlu0 %211, %v209
    %v213 = vpop.permute.xlu0 %212
    %v215 = vmul.f32 %v132, %v213
    %v216 = vld [vmem:[#allocation5] sm:$0xff]
    %v217 = vld [vmem:[#allocation5 + $0x8] sm:$0xff]
    %v218 = vld [vmem:[#allocation5 + $0x10] sm:$0xff]
    %v219 = vlaneseq
    %v220 = vshrl.u32 %v219, 7
    %v221 = vsub.s32 0, %v220
    %v222 = vrot.slane %v50, %v221
    %v224 = vsel %vm52, %v215, 0
    %226 = vmatprep.subr.mxu0 0.0
    %227 = vmatpush1.msra.mxu0 0.0
    %228 = vmatprep.subr.mxu0 0.0
    %229 = vmatpush1.msra.mxu0 0.0
    %230 = vmatprep.subr.mxu0 0.0
    %231 = vmatpush1.msra.mxu0 0.0
    %232 = vmatprep.subr.mxu0 0.0
    %233 = vmatpush1.msra.mxu0 0.0
    %234 = vmatprep.subr.mxu0 0.0
    %235 = vmatpush1.msra.mxu0 0.0
    %236 = vmatprep.subr.mxu0 0.0
    %237 = vmatpush1.msra.mxu0 0.0
    %238 = vmatprep.subr.mxu0 0.0
    %239 = vmatpush1.msra.mxu0 0.0
    %240 = vmatprep.subr.mxu0 0.0
    %241 = vmatpush1.msra.mxu0 0.0
    %242 = vmatprep.subr.mxu0 0.0
    %243 = vmatpush1.msra.mxu0 0.0
    %244 = vmatprep.subr.mxu0 0.0
    %245 = vmatpush1.msra.mxu0 0.0
    %246 = vmatprep.subr.mxu0 0.0
    %247 = vmatpush1.msra.mxu0 0.0
    %248 = vmatprep.subr.mxu0 0.0
    %249 = vmatpush1.msra.mxu0 0.0
    %250 = vmatprep.subr.mxu0 0.0
    %251 = vmatpush1.msra.mxu0 0.0
    %252 = vmatprep.subr.mxu0 0.0
    %253 = vmatpush1.msra.mxu0 %v218
    %254 = vmatprep.subr.mxu0 0.0
    %255 = vmatpush1.msra.mxu0 %v217
    %256 = vmatprep.subr.mxu0 0.0
    %257 = vmatpush1.msra.mxu0 %v216
    %258 = vmatprep.subr.mxu0 0.0
    %259 = vmatpush2.msra.mxu0 0.0
    %260 = vmatprep.subr.mxu0 0.0
    %261 = vmatpush2.msra.mxu0 0.0
    %262 = vmatprep.subr.mxu0 0.0
    %263 = vmatpush2.msra.mxu0 0.0
    %264 = vmatprep.subr.mxu0 0.0
    %265 = vmatpush2.msra.mxu0 0.0
    %266 = vmatprep.subr.mxu0 0.0
    %267 = vmatpush2.msra.mxu0 0.0
    %268 = vmatprep.subr.mxu0 0.0
    %269 = vmatpush2.msra.mxu0 0.0
    %270 = vmatprep.subr.mxu0 0.0
    %271 = vmatpush2.msra.mxu0 0.0
    %272 = vmatprep.subr.mxu0 0.0
    %273 = vmatpush2.msra.mxu0 0.0
    %274 = vmatprep.subr.mxu0 0.0
    %275 = vmatpush2.msra.mxu0 0.0
    %276 = vmatprep.subr.mxu0 0.0
    %277 = vmatpush2.msra.mxu0 0.0
    %278 = vmatprep.subr.mxu0 0.0
    %279 = vmatpush2.msra.mxu0 0.0
    %280 = vmatprep.subr.mxu0 0.0
    %281 = vmatpush2.msra.mxu0 0.0
    %282 = vmatprep.subr.mxu0 0.0
    %283 = vmatpush2.msra.mxu0 0.0
    %284 = vmatprep.subr.mxu0 0.0
    %285 = vmatpush2.msra.mxu0 0.0
    %286 = vmatprep.subr.mxu0 0.0
    %287 = vmatpush2.msra.mxu0 0.0
    %288 = vmatprep.subr.mxu0 0.0
    %289 = vmatpush2.msra.mxu0 0.0
    %290 = vmatprep.mubr.f32.mxu0 0.0
    %291 = vmatmul.mubr.f32.gmra.mxu0 %v224
    %v292 = vpop.f32.mrf.mxu0
    %v293 = vadd.f32 %v222, %v292
    %v294 = vpop.f32.mrf.mxu0
    %295 = vdwg.mxu0
    %v296 = vmax.f32 %v293, 0.0
    %vm297 = vcmask 261120
    %v299 = vsel %vm297, %v296, 0
    %301 = vmatprep.subr.mxu0 0.0
    %302 = vmatpush1.msra.mxu0 0.0
    %303 = vmatprep.subr.mxu0 0.0
    %304 = vmatpush1.msra.mxu0 0.0
    %305 = vmatprep.subr.mxu0 0.0
    %306 = vmatpush1.msra.mxu0 0.0
    %307 = vmatprep.subr.mxu0 0.0
    %308 = vmatpush1.msra.mxu0 0.0
    %309 = vmatprep.subr.mxu0 0.0
    %310 = vmatpush1.msra.mxu0 0.0
    %311 = vmatprep.subr.mxu0 0.0
    %312 = vmatpush1.msra.mxu0 0.0
    %313 = vmatprep.subr.mxu0 0.0
    %314 = vmatpush1.msra.mxu0 0.0
    %315 = vmatprep.subr.mxu0 0.0
    %316 = vmatpush1.msra.mxu0 0.0
    %317 = vmatprep.subr.mxu0 0.0
    %318 = vmatpush1.msra.mxu0 0.0
    %319 = vmatprep.subr.mxu0 0.0
    %320 = vmatpush1.msra.mxu0 0.0
    %321 = vmatprep.subr.mxu0 0.0
    %322 = vmatpush1.msra.mxu0 0.0
    %323 = vmatprep.subr.mxu0 0.0
    %324 = vmatpush1.msra.mxu0 0.0
    %325 = vmatprep.subr.mxu0 0.0
    %326 = vmatpush1.msra.mxu0 1.0
    %327 = vmatprep.subr.mxu0 0.0
    %328 = vmatpush1.msra.mxu0 1.0
    %329 = vmatprep.subr.mxu0 0.0
    %330 = vmatpush1.msra.mxu0 1.0
    %331 = vmatprep.subr.mxu0 0.0
    %332 = vmatpush1.msra.mxu0 1.0
    %333 = vmatprep.subr.mxu0 0.0
    %334 = vmatpush2.msra.mxu0 0.0
    %335 = vmatprep.subr.mxu0 0.0
    %336 = vmatpush2.msra.mxu0 0.0
    %337 = vmatprep.subr.mxu0 0.0
    %338 = vmatpush2.msra.mxu0 0.0
    %339 = vmatprep.subr.mxu0 0.0
    %340 = vmatpush2.msra.mxu0 0.0
    %341 = vmatprep.subr.mxu0 0.0
    %342 = vmatpush2.msra.mxu0 0.0
    %343 = vmatprep.subr.mxu0 0.0
    %344 = vmatpush2.msra.mxu0 0.0
    %345 = vmatprep.subr.mxu0 0.0
    %346 = vmatpush2.msra.mxu0 0.0
    %347 = vmatprep.subr.mxu0 0.0
    %348 = vmatpush2.msra.mxu0 0.0
    %349 = vmatprep.subr.mxu0 0.0
    %350 = vmatpush2.msra.mxu0 0.0
    %351 = vmatprep.subr.mxu0 0.0
    %352 = vmatpush2.msra.mxu0 0.0
    %353 = vmatprep.subr.mxu0 0.0
    %354 = vmatpush2.msra.mxu0 0.0
    %355 = vmatprep.subr.mxu0 0.0
    %356 = vmatpush2.msra.mxu0 0.0
    %357 = vmatprep.subr.mxu0 0.0
    %358 = vmatpush2.msra.mxu0 0.0
    %359 = vmatprep.subr.mxu0 0.0
    %360 = vmatpush2.msra.mxu0 0.0
    %361 = vmatprep.subr.mxu0 0.0
    %362 = vmatpush2.msra.mxu0 0.0
    %363 = vmatprep.subr.mxu0 0.0
    %364 = vmatpush2.msra.mxu0 0.0
    %365 = vmatprep.mubr.f32.mxu0 0.0
    %366 = vmatmul.mubr.f32.gmra.mxu0 %v299
    %v367 = vpop.f32.mrf.mxu0
    %v368 = vadd.f32 0.0, %v367
    %v369 = vpop.f32.mrf.mxu0
    %370 = vdwg.mxu0
    %v371 = vmul.f32 %v368, 0.03125
    %373 = vset.pattern.permute.xlu0 0
    %374 = vperm.xlu0 %373, %v371
    %v375 = vpop.permute.xlu0 %374
    %v377 = vsub.f32 %v296, %v375
    %v378 = vmul.f32 %v377, %v377
    %v380 = vsel %vm297, %v378, 0
    %382 = vmatprep.subr.mxu0 0.0
    %383 = vmatpush1.msra.mxu0 0.0
    %384 = vmatprep.subr.mxu0 0.0
    %385 = vmatpush1.msra.mxu0 0.0
    %386 = vmatprep.subr.mxu0 0.0
    %387 = vmatpush1.msra.mxu0 0.0
    %388 = vmatprep.subr.mxu0 0.0
    %389 = vmatpush1.msra.mxu0 0.0
    %390 = vmatprep.subr.mxu0 0.0
    %391 = vmatpush1.msra.mxu0 0.0
    %392 = vmatprep.subr.mxu0 0.0
    %393 = vmatpush1.msra.mxu0 0.0
    %394 = vmatprep.subr.mxu0 0.0
    %395 = vmatpush1.msra.mxu0 0.0
    %396 = vmatprep.subr.mxu0 0.0
    %397 = vmatpush1.msra.mxu0 0.0
    %398 = vmatprep.subr.mxu0 0.0
    %399 = vmatpush1.msra.mxu0 0.0
    %400 = vmatprep.subr.mxu0 0.0
    %401 = vmatpush1.msra.mxu0 0.0
    %402 = vmatprep.subr.mxu0 0.0
    %403 = vmatpush1.msra.mxu0 0.0
    %404 = vmatprep.subr.mxu0 0.0
    %405 = vmatpush1.msra.mxu0 0.0
    %406 = vmatprep.subr.mxu0 0.0
    %407 = vmatpush1.msra.mxu0 1.0
    %408 = vmatprep.subr.mxu0 0.0
    %409 = vmatpush1.msra.mxu0 1.0
    %410 = vmatprep.subr.mxu0 0.0
    %411 = vmatpush1.msra.mxu0 1.0
    %412 = vmatprep.subr.mxu0 0.0
    %413 = vmatpush1.msra.mxu0 1.0
    %414 = vmatprep.subr.mxu0 0.0
    %415 = vmatpush2.msra.mxu0 0.0
    %416 = vmatprep.subr.mxu0 0.0
    %417 = vmatpush2.msra.mxu0 0.0
    %418 = vmatprep.subr.mxu0 0.0
    %419 = vmatpush2.msra.mxu0 0.0
    %420 = vmatprep.subr.mxu0 0.0
    %421 = vmatpush2.msra.mxu0 0.0
    %422 = vmatprep.subr.mxu0 0.0
    %423 = vmatpush2.msra.mxu0 0.0
    %424 = vmatprep.subr.mxu0 0.0
    %425 = vmatpush2.msra.mxu0 0.0
    %426 = vmatprep.subr.mxu0 0.0
    %427 = vmatpush2.msra.mxu0 0.0
    %428 = vmatprep.subr.mxu0 0.0
    %429 = vmatpush2.msra.mxu0 0.0
    %430 = vmatprep.subr.mxu0 0.0
    %431 = vmatpush2.msra.mxu0 0.0
    %432 = vmatprep.subr.mxu0 0.0
    %433 = vmatpush2.msra.mxu0 0.0
    %434 = vmatprep.subr.mxu0 0.0
    %435 = vmatpush2.msra.mxu0 0.0
    %436 = vmatprep.subr.mxu0 0.0
    %437 = vmatpush2.msra.mxu0 0.0
    %438 = vmatprep.subr.mxu0 0.0
    %439 = vmatpush2.msra.mxu0 0.0
    %440 = vmatprep.subr.mxu0 0.0
    %441 = vmatpush2.msra.mxu0 0.0
    %442 = vmatprep.subr.mxu0 0.0
    %443 = vmatpush2.msra.mxu0 0.0
    %444 = vmatprep.subr.mxu0 0.0
    %445 = vmatpush2.msra.mxu0 0.0
    %446 = vmatprep.mubr.f32.mxu0 0.0
    %447 = vmatmul.mubr.f32.gmra.mxu0 %v380
    %v448 = vpop.f32.mrf.mxu0
    %v449 = vadd.f32 0.0, %v448
    %v450 = vpop.f32.mrf.mxu0
    %451 = vdwg.mxu0
    %v452 = vmul.f32 %v449, 0.03125
    %v453 = vadd.f32 %v452, 1e-05
    %v454 = vrsqrt.pop %v453
    %456 = vset.pattern.permute.xlu0 0
    %457 = vperm.xlu0 %456, %v454
    %v458 = vpop.permute.xlu0 %457
    %v460 = vmul.f32 %v377, %v458
    %v461 = vld [vmem:[%s3] sm:$0xff]
    %v462 = vld [vmem:[%s3 + $0x8] sm:$0xff]
    %v463 = vld [vmem:[%s3 + $0x10] sm:$0xff]
    %v464 = vld [vmem:[%s3 + $0x18] sm:$0xff]
    %v465 = vlaneseq
    %v466 = vshrl.u32 %v465, 7
    %v467 = vsub.s32 1, %v466
    %v468 = vrot.slane %v50, %v467
    %v470 = vsel %vm297, %v460, 0
    %472 = vmatprep.subr.mxu0 0.0
    %473 = vmatpush1.msra.mxu0 0.0
    %474 = vmatprep.subr.mxu0 0.0
    %475 = vmatpush1.msra.mxu0 0.0
    %476 = vmatprep.subr.mxu0 0.0
    %477 = vmatpush1.msra.mxu0 0.0
    %478 = vmatprep.subr.mxu0 0.0
    %479 = vmatpush1.msra.mxu0 0.0
    %480 = vmatprep.subr.mxu0 0.0
    %481 = vmatpush1.msra.mxu0 0.0
    %482 = vmatprep.subr.mxu0 0.0
    %483 = vmatpush1.msra.mxu0 0.0
    %484 = vmatprep.subr.mxu0 0.0
    %485 = vmatpush1.msra.mxu0 0.0
    %486 = vmatprep.subr.mxu0 0.0
    %487 = vmatpush1.msra.mxu0 0.0
    %488 = vmatprep.subr.mxu0 0.0
    %489 = vmatpush1.msra.mxu0 0.0
    %490 = vmatprep.subr.mxu0 0.0
    %491 = vmatpush1.msra.mxu0 0.0
    %492 = vmatprep.subr.mxu0 0.0
    %493 = vmatpush1.msra.mxu0 0.0
    %494 = vmatprep.subr.mxu0 0.0
    %495 = vmatpush1.msra.mxu0 0.0
    %496 = vmatprep.subr.mxu0 0.0
    %497 = vmatpush1.msra.mxu0 %v464
    %498 = vmatprep.subr.mxu0 0.0
    %499 = vmatpush1.msra.mxu0 %v463
    %500 = vmatprep.subr.mxu0 0.0
    %501 = vmatpush1.msra.mxu0 %v462
    %502 = vmatprep.subr.mxu0 0.0
    %503 = vmatpush1.msra.mxu0 %v461
    %504 = vmatprep.subr.mxu0 0.0
    %505 = vmatpush2.msra.mxu0 0.0
    %506 = vmatprep.subr.mxu0 0.0
    %507 = vmatpush2.msra.mxu0 0.0
    %508 = vmatprep.subr.mxu0 0.0
    %509 = vmatpush2.msra.mxu0 0.0
    %510 = vmatprep.subr.mxu0 0.0
    %511 = vmatpush2.msra.mxu0 0.0
    %512 = vmatprep.subr.mxu0 0.0
    %513 = vmatpush2.msra.mxu0 0.0
    %514 = vmatprep.subr.mxu0 0.0
    %515 = vmatpush2.msra.mxu0 0.0
    %516 = vmatprep.subr.mxu0 0.0
    %517 = vmatpush2.msra.mxu0 0.0
    %518 = vmatprep.subr.mxu0 0.0
    %519 = vmatpush2.msra.mxu0 0.0
    %520 = vmatprep.subr.mxu0 0.0
    %521 = vmatpush2.msra.mxu0 0.0
    %522 = vmatprep.subr.mxu0 0.0
    %523 = vmatpush2.msra.mxu0 0.0
    %524 = vmatprep.subr.mxu0 0.0
    %525 = vmatpush2.msra.mxu0 0.0
    %526 = vmatprep.subr.mxu0 0.0
    %527 = vmatpush2.msra.mxu0 0.0
    %528 = vmatprep.subr.mxu0 0.0
    %529 = vmatpush2.msra.mxu0 0.0
    %530 = vmatprep.subr.mxu0 0.0
    %531 = vmatpush2.msra.mxu0 0.0
    %532 = vmatprep.subr.mxu0 0.0
    %533 = vmatpush2.msra.mxu0 0.0
    %534 = vmatprep.subr.mxu0 0.0
    %535 = vmatpush2.msra.mxu0 0.0
    %536 = vmatprep.mubr.f32.mxu0 0.0
    %537 = vmatmul.mubr.f32.gmra.mxu0 %v470
    %v538 = vpop.f32.mrf.mxu0
    %v539 = vadd.f32 %v468, %v538
    %v540 = vpop.f32.mrf.mxu0
    %541 = vdwg.mxu0
    %v542 = vmax.f32 %v539, 0.0
    %v544 = vsel %vm297, %v542, 0
    %546 = vmatprep.subr.mxu0 0.0
    %547 = vmatpush1.msra.mxu0 0.0
    %548 = vmatprep.subr.mxu0 0.0
    %549 = vmatpush1.msra.mxu0 0.0
    %550 = vmatprep.subr.mxu0 0.0
    %551 = vmatpush1.msra.mxu0 0.0
    %552 = vmatprep.subr.mxu0 0.0
    %553 = vmatpush1.msra.mxu0 0.0
    %554 = vmatprep.subr.mxu0 0.0
    %555 = vmatpush1.msra.mxu0 0.0
    %556 = vmatprep.subr.mxu0 0.0
    %557 = vmatpush1.msra.mxu0 0.0
    %558 = vmatprep.subr.mxu0 0.0
    %559 = vmatpush1.msra.mxu0 0.0
    %560 = vmatprep.subr.mxu0 0.0
    %561 = vmatpush1.msra.mxu0 0.0
    %562 = vmatprep.subr.mxu0 0.0
    %563 = vmatpush1.msra.mxu0 0.0
    %564 = vmatprep.subr.mxu0 0.0
    %565 = vmatpush1.msra.mxu0 0.0
    %566 = vmatprep.subr.mxu0 0.0
    %567 = vmatpush1.msra.mxu0 0.0
    %568 = vmatprep.subr.mxu0 0.0
    %569 = vmatpush1.msra.mxu0 0.0
    %570 = vmatprep.subr.mxu0 0.0
    %571 = vmatpush1.msra.mxu0 1.0
    %572 = vmatprep.subr.mxu0 0.0
    %573 = vmatpush1.msra.mxu0 1.0
    %574 = vmatprep.subr.mxu0 0.0
    %575 = vmatpush1.msra.mxu0 1.0
    %576 = vmatprep.subr.mxu0 0.0
    %577 = vmatpush1.msra.mxu0 1.0
    %578 = vmatprep.subr.mxu0 0.0
    %579 = vmatpush2.msra.mxu0 0.0
    %580 = vmatprep.subr.mxu0 0.0
    %581 = vmatpush2.msra.mxu0 0.0
    %582 = vmatprep.subr.mxu0 0.0
    %583 = vmatpush2.msra.mxu0 0.0
    %584 = vmatprep.subr.mxu0 0.0
    %585 = vmatpush2.msra.mxu0 0.0
    %586 = vmatprep.subr.mxu0 0.0
    %587 = vmatpush2.msra.mxu0 0.0
    %588 = vmatprep.subr.mxu0 0.0
    %589 = vmatpush2.msra.mxu0 0.0
    %590 = vmatprep.subr.mxu0 0.0
    %591 = vmatpush2.msra.mxu0 0.0
    %592 = vmatprep.subr.mxu0 0.0
    %593 = vmatpush2.msra.mxu0 0.0
    %594 = vmatprep.subr.mxu0 0.0
    %595 = vmatpush2.msra.mxu0 0.0
    %596 = vmatprep.subr.mxu0 0.0
    %597 = vmatpush2.msra.mxu0 0.0
    %598 = vmatprep.subr.mxu0 0.0
    %599 = vmatpush2.msra.mxu0 0.0
    %600 = vmatprep.subr.mxu0 0.0
    %601 = vmatpush2.msra.mxu0 0.0
    %602 = vmatprep.subr.mxu0 0.0
    %603 = vmatpush2.msra.mxu0 0.0
    %604 = vmatprep.subr.mxu0 0.0
    %605 = vmatpush2.msra.mxu0 0.0
    %606 = vmatprep.subr.mxu0 0.0
    %607 = vmatpush2.msra.mxu0 0.0
    %608 = vmatprep.subr.mxu0 0.0
    %609 = vmatpush2.msra.mxu0 0.0
    %610 = vmatprep.mubr.f32.mxu0 0.0
    %611 = vmatmul.mubr.f32.gmra.mxu0 %v544
    %v612 = vpop.f32.mrf.mxu0
    %v613 = vadd.f32 0.0, %v612
    %v614 = vpop.f32.mrf.mxu0
    %615 = vdwg.mxu0
    %v616 = vmul.f32 %v613, 0.03125
    %618 = vset.pattern.permute.xlu0 0
    %619 = vperm.xlu0 %618, %v616
    %v620 = vpop.permute.xlu0 %619
    %v622 = vsub.f32 %v542, %v620
    %v623 = vmul.f32 %v622, %v622
    %v625 = vsel %vm297, %v623, 0
    %627 = vmatprep.subr.mxu0 0.0
    %628 = vmatpush1.msra.mxu0 0.0
    %629 = vmatprep.subr.mxu0 0.0
    %630 = vmatpush1.msra.mxu0 0.0
    %631 = vmatprep.subr.mxu0 0.0
    %632 = vmatpush1.msra.mxu0 0.0
    %633 = vmatprep.subr.mxu0 0.0
    %634 = vmatpush1.msra.mxu0 0.0
    %635 = vmatprep.subr.mxu0 0.0
    %636 = vmatpush1.msra.mxu0 0.0
    %637 = vmatprep.subr.mxu0 0.0
    %638 = vmatpush1.msra.mxu0 0.0
    %639 = vmatprep.subr.mxu0 0.0
    %640 = vmatpush1.msra.mxu0 0.0
    %641 = vmatprep.subr.mxu0 0.0
    %642 = vmatpush1.msra.mxu0 0.0
    %643 = vmatprep.subr.mxu0 0.0
    %644 = vmatpush1.msra.mxu0 0.0
    %645 = vmatprep.subr.mxu0 0.0
    %646 = vmatpush1.msra.mxu0 0.0
    %647 = vmatprep.subr.mxu0 0.0
    %648 = vmatpush1.msra.mxu0 0.0
    %649 = vmatprep.subr.mxu0 0.0
    %650 = vmatpush1.msra.mxu0 0.0
    %651 = vmatprep.subr.mxu0 0.0
    %652 = vmatpush1.msra.mxu0 1.0
    %653 = vmatprep.subr.mxu0 0.0
    %654 = vmatpush1.msra.mxu0 1.0
    %655 = vmatprep.subr.mxu0 0.0
    %656 = vmatpush1.msra.mxu0 1.0
    %657 = vmatprep.subr.mxu0 0.0
    %658 = vmatpush1.msra.mxu0 1.0
    %659 = vmatprep.subr.mxu0 0.0
    %660 = vmatpush2.msra.mxu0 0.0
    %661 = vmatprep.subr.mxu0 0.0
    %662 = vmatpush2.msra.mxu0 0.0
    %663 = vmatprep.subr.mxu0 0.0
    %664 = vmatpush2.msra.mxu0 0.0
    %665 = vmatprep.subr.mxu0 0.0
    %666 = vmatpush2.msra.mxu0 0.0
    %667 = vmatprep.subr.mxu0 0.0
    %668 = vmatpush2.msra.mxu0 0.0
    %669 = vmatprep.subr.mxu0 0.0
    %670 = vmatpush2.msra.mxu0 0.0
    %671 = vmatprep.subr.mxu0 0.0
    %672 = vmatpush2.msra.mxu0 0.0
    %673 = vmatprep.subr.mxu0 0.0
    %674 = vmatpush2.msra.mxu0 0.0
    %675 = vmatprep.subr.mxu0 0.0
    %676 = vmatpush2.msra.mxu0 0.0
    %677 = vmatprep.subr.mxu0 0.0
    %678 = vmatpush2.msra.mxu0 0.0
    %679 = vmatprep.subr.mxu0 0.0
    %680 = vmatpush2.msra.mxu0 0.0
    %681 = vmatprep.subr.mxu0 0.0
    %682 = vmatpush2.msra.mxu0 0.0
    %683 = vmatprep.subr.mxu0 0.0
    %684 = vmatpush2.msra.mxu0 0.0
    %685 = vmatprep.subr.mxu0 0.0
    %686 = vmatpush2.msra.mxu0 0.0
    %687 = vmatprep.subr.mxu0 0.0
    %688 = vmatpush2.msra.mxu0 0.0
    %689 = vmatprep.subr.mxu0 0.0
    %690 = vmatpush2.msra.mxu0 0.0
    %691 = vmatprep.mubr.f32.mxu0 0.0
    %692 = vmatmul.mubr.f32.gmra.mxu0 %v625
    %v693 = vpop.f32.mrf.mxu0
    %v694 = vadd.f32 0.0, %v693
    %v695 = vpop.f32.mrf.mxu0
    %696 = vdwg.mxu0
    %v697 = vmul.f32 %v694, 0.03125
    %v698 = vadd.f32 %v697, 1e-05
    %v699 = vrsqrt.pop %v698
    %701 = vset.pattern.permute.xlu0 0
    %702 = vperm.xlu0 %701, %v699
    %v703 = vpop.permute.xlu0 %702
    %v705 = vmul.f32 %v622, %v703
    %v706 = vld [vmem:[%s4] sm:$0xff]
    %v707 = vld [vmem:[%s4 + $0x8] sm:$0xff]
    %v708 = vld [vmem:[%s4 + $0x10] sm:$0xff]
    %v709 = vld [vmem:[%s4 + $0x18] sm:$0xff]
    %v710 = vlaneseq
    %v711 = vshrl.u32 %v710, 7
    %v712 = vsub.s32 2, %v711
    %v713 = vrot.slane %v50, %v712
    %v715 = vsel %vm297, %v705, 0
    %717 = vmatprep.subr.mxu0 0.0
    %718 = vmatpush1.msra.mxu0 0.0
    %719 = vmatprep.subr.mxu0 0.0
    %720 = vmatpush1.msra.mxu0 0.0
    %721 = vmatprep.subr.mxu0 0.0
    %722 = vmatpush1.msra.mxu0 0.0
    %723 = vmatprep.subr.mxu0 0.0
    %724 = vmatpush1.msra.mxu0 0.0
    %725 = vmatprep.subr.mxu0 0.0
    %726 = vmatpush1.msra.mxu0 0.0
    %727 = vmatprep.subr.mxu0 0.0
    %728 = vmatpush1.msra.mxu0 0.0
    %729 = vmatprep.subr.mxu0 0.0
    %730 = vmatpush1.msra.mxu0 0.0
    %731 = vmatprep.subr.mxu0 0.0
    %732 = vmatpush1.msra.mxu0 0.0
    %733 = vmatprep.subr.mxu0 0.0
    %734 = vmatpush1.msra.mxu0 0.0
    %735 = vmatprep.subr.mxu0 0.0
    %736 = vmatpush1.msra.mxu0 0.0
    %737 = vmatprep.subr.mxu0 0.0
    %738 = vmatpush1.msra.mxu0 0.0
    %739 = vmatprep.subr.mxu0 0.0
    %740 = vmatpush1.msra.mxu0 0.0
    %741 = vmatprep.subr.mxu0 0.0
    %742 = vmatpush1.msra.mxu0 %v709
    %743 = vmatprep.subr.mxu0 0.0
    %744 = vmatpush1.msra.mxu0 %v708
    %745 = vmatprep.subr.mxu0 0.0
    %746 = vmatpush1.msra.mxu0 %v707
    %747 = vmatprep.subr.mxu0 0.0
    %748 = vmatpush1.msra.mxu0 %v706
    %749 = vmatprep.subr.mxu0 0.0
    %750 = vmatpush2.msra.mxu0 0.0
    %751 = vmatprep.subr.mxu0 0.0
    %752 = vmatpush2.msra.mxu0 0.0
    %753 = vmatprep.subr.mxu0 0.0
    %754 = vmatpush2.msra.mxu0 0.0
    %755 = vmatprep.subr.mxu0 0.0
    %756 = vmatpush2.msra.mxu0 0.0
    %757 = vmatprep.subr.mxu0 0.0
    %758 = vmatpush2.msra.mxu0 0.0
    %759 = vmatprep.subr.mxu0 0.0
    %760 = vmatpush2.msra.mxu0 0.0
    %761 = vmatprep.subr.mxu0 0.0
    %762 = vmatpush2.msra.mxu0 0.0
    %763 = vmatprep.subr.mxu0 0.0
    %764 = vmatpush2.msra.mxu0 0.0
    %765 = vmatprep.subr.mxu0 0.0
    %766 = vmatpush2.msra.mxu0 0.0
    %767 = vmatprep.subr.mxu0 0.0
    %768 = vmatpush2.msra.mxu0 0.0
    %769 = vmatprep.subr.mxu0 0.0
    %770 = vmatpush2.msra.mxu0 0.0
    %771 = vmatprep.subr.mxu0 0.0
    %772 = vmatpush2.msra.mxu0 0.0
    %773 = vmatprep.subr.mxu0 0.0
    %774 = vmatpush2.msra.mxu0 0.0
    %775 = vmatprep.subr.mxu0 0.0
    %776 = vmatpush2.msra.mxu0 0.0
    %777 = vmatprep.subr.mxu0 0.0
    %778 = vmatpush2.msra.mxu0 0.0
    %779 = vmatprep.subr.mxu0 0.0
    %780 = vmatpush2.msra.mxu0 0.0
    %781 = vmatprep.mubr.f32.mxu0 0.0
    %782 = vmatmul.mubr.f32.gmra.mxu0 %v715
    %v783 = vpop.f32.mrf.mxu0
    %v784 = vadd.f32 %v713, %v783
    %v785 = vpop.f32.mrf.mxu0
    %786 = vdwg.mxu0
    %v787 = vld [vmem:[#allocation2] sm:$0xff]
    %vm788 = vcmp.gt.f32.partialorder %v787, 0.5
    %v789 = vsel %vm788, %v784, -1e+10
    %vm790 = vcmask 48128
    %v791 = vsel %vm790, %v789, -inf
    %792 = vmax.xlane.f32.xlu0 %v791
    %v793 = vpop.xlane.xlu0 %792
    %v794 = vlaneseq
    %v795 = vand.u32 %v794, 127
    %vm796 = vcmp.eq.f32.partialorder %v789, %v793
    %v797 = vsel %vm796, %v795, 6
    %v798 = vsel %vm790, %v797, 2147483647
    %v799 = vand.u32 %v798, 65535
    %v800 = vshra.s32 %v798, 16
    %v801 = vcvt.s32.f32 %v799
    %v802 = vcvt.s32.f32 %v800
    %803 = vmin.xlane.f32.xlu0 %v802
    %v804 = vpop.xlane.xlu0 %803
    %vm805 = vcmp.eq.f32.partialorder %v802, %v804
    %v806 = vsel %vm805, %v801, inf
    %807 = vmin.xlane.f32.xlu0 %v806
    %v808 = vpop.xlane.xlu0 %807
    %v809 = vcvt.f32.s32 %v808
    %v810 = vcvt.f32.s32 %v804
    %v811 = vshll.u32 %v810, 16
    %v812 = vadd.s32 %v811, %v809
    %v813 = vsub.f32 %v789, %v793
    %v814 = vmul.f32 %v813, 1.442695
    %v815 = vpow.pop %v814
    %v817 = vsel %vm790, %v815, 0
    %vm819 = vcmask 1045504
    %v821 = vsel %vm819, 1.0, 0
    %823 = vmatprep.subr.mxu0 0.0
    %824 = vmatpush1.msra.mxu0 0.0
    %825 = vmatprep.subr.mxu0 0.0
    %826 = vmatpush1.msra.mxu0 0.0
    %827 = vmatprep.subr.mxu0 0.0
    %828 = vmatpush1.msra.mxu0 0.0
    %829 = vmatprep.subr.mxu0 0.0
    %830 = vmatpush1.msra.mxu0 0.0
    %831 = vmatprep.subr.mxu0 0.0
    %832 = vmatpush1.msra.mxu0 0.0
    %833 = vmatprep.subr.mxu0 0.0
    %834 = vmatpush1.msra.mxu0 0.0
    %835 = vmatprep.subr.mxu0 0.0
    %836 = vmatpush1.msra.mxu0 0.0
    %837 = vmatprep.subr.mxu0 0.0
    %838 = vmatpush1.msra.mxu0 0.0
    %839 = vmatprep.subr.mxu0 0.0
    %840 = vmatpush1.msra.mxu0 0.0
    %841 = vmatprep.subr.mxu0 0.0
    %842 = vmatpush1.msra.mxu0 0.0
    %843 = vmatprep.subr.mxu0 0.0
    %844 = vmatpush1.msra.mxu0 0.0
    %845 = vmatprep.subr.mxu0 0.0
    %846 = vmatpush1.msra.mxu0 0.0
    %847 = vmatprep.subr.mxu0 0.0
    %848 = vmatpush1.msra.mxu0 0.0
    %849 = vmatprep.subr.mxu0 0.0
    %850 = vmatpush1.msra.mxu0 0.0
    %851 = vmatprep.subr.mxu0 0.0
    %852 = vmatpush1.msra.mxu0 0.0
    %853 = vmatprep.subr.mxu0 0.0
    %854 = vmatpush1.msra.mxu0 %v821
    %855 = vmatprep.subr.mxu0 0.0
    %856 = vmatpush2.msra.mxu0 0.0
    %857 = vmatprep.subr.mxu0 0.0
    %858 = vmatpush2.msra.mxu0 0.0
    %859 = vmatprep.subr.mxu0 0.0
    %860 = vmatpush2.msra.mxu0 0.0
    %861 = vmatprep.subr.mxu0 0.0
    %862 = vmatpush2.msra.mxu0 0.0
    %863 = vmatprep.subr.mxu0 0.0
    %864 = vmatpush2.msra.mxu0 0.0
    %865 = vmatprep.subr.mxu0 0.0
    %866 = vmatpush2.msra.mxu0 0.0
    %867 = vmatprep.subr.mxu0 0.0
    %868 = vmatpush2.msra.mxu0 0.0
    %869 = vmatprep.subr.mxu0 0.0
    %870 = vmatpush2.msra.mxu0 0.0
    %871 = vmatprep.subr.mxu0 0.0
    %872 = vmatpush2.msra.mxu0 0.0
    %873 = vmatprep.subr.mxu0 0.0
    %874 = vmatpush2.msra.mxu0 0.0
    %875 = vmatprep.subr.mxu0 0.0
    %876 = vmatpush2.msra.mxu0 0.0
    %877 = vmatprep.subr.mxu0 0.0
    %878 = vmatpush2.msra.mxu0 0.0
    %879 = vmatprep.subr.mxu0 0.0
    %880 = vmatpush2.msra.mxu0 0.0
    %881 = vmatprep.subr.mxu0 0.0
    %882 = vmatpush2.msra.mxu0 0.0
    %883 = vmatprep.subr.mxu0 0.0
    %884 = vmatpush2.msra.mxu0 0.0
    %885 = vmatprep.subr.mxu0 0.0
    %886 = vmatpush2.msra.mxu0 0.0
    %887 = vmatprep.mubr.f32.mxu0 0.0
    %888 = vmatmul.mubr.f32.gmra.mxu0 %v817
    %v889 = vpop.f32.mrf.mxu0
    %v890 = vadd.f32 0.0, %v889
    %v891 = vpop.f32.mrf.mxu0
    %892 = vdwg.mxu0
    %v893 = vlog2.pop %v890
    %v894 = vmul.f32 %v893, 0.6931472
    %v895 = vsub.f32 0.0, %v894
    %v896 = vcvt.s32.f32 %v812
    %vm897 = vcmask 7168
    %v898 = vsel %vm897, %v895, %v896
    %899 = vxpose.xlu0.b32.start [1/16] %v898, 128
    %900 = vxpose.xlu0.b32.cont [2/16] 0.0, 128
    %901 = vxpose.xlu0.b32.cont [3/16] 0.0, 128
    %902 = vxpose.xlu0.b32.cont [4/16] 0.0, 128
    %903 = vxpose.xlu0.b32.cont [5/16] 0.0, 128
    %904 = vxpose.xlu0.b32.cont [6/16] 0.0, 128
    %905 = vxpose.xlu0.b32.cont [7/16] 0.0, 128
    %906 = vxpose.xlu0.b32.cont [8/16] 0.0, 128
    %907 = vxpose.xlu0.b32.cont [9/16] 0.0, 128
    %908 = vxpose.xlu0.b32.cont [10/16] 0.0, 128
    %909 = vxpose.xlu0.b32.cont [11/16] 0.0, 128
    %910 = vxpose.xlu0.b32.cont [12/16] 0.0, 128
    %911 = vxpose.xlu0.b32.cont [13/16] 0.0, 128
    %912 = vxpose.xlu0.b32.cont [14/16] 0.0, 128
    %913 = vxpose.xlu0.b32.cont [15/16] 0.0, 128
    %914 = vxpose.xlu0.b32.end [16/16] 0.0, 128
    %v915 = vpop.trf.xlu0
    %v916 = vpop.trf.xlu0
    %v917 = vpop.trf.xlu0
    %v918 = vpop.trf.xlu0
    %v919 = vpop.trf.xlu0
    %v920 = vpop.trf.xlu0
    %v921 = vpop.trf.xlu0
    %v922 = vpop.trf.xlu0
    %v923 = vpop.trf.xlu0
    %v924 = vpop.trf.xlu0
    %v925 = vpop.trf.xlu0
    %v926 = vpop.trf.xlu0
    %v927 = vpop.trf.xlu0
    %v928 = vpop.trf.xlu0
    %v929 = vpop.trf.xlu0
    %v930 = vpop.trf.xlu0
    %vm931 = vcmask 58368
    %932 = vst.msk [vmem:[#allocation7] sm:$0x3] %vm931, %v915
    // Predicated region
    $region34: #{tpu_custom_call.1} parent=1 // pred_check
      _
    $region35: #{tpu_custom_call.1} parent=1 // pred_check_branch
      %934 = sbr.rel (0) target = $region37
    $region36: #{tpu_custom_call.1} parent=1 // pred_region
      %s936 = ssub.s32 32, 32
      %937 = vsyncadd [#allocation4], %s936
      %s939 = sshll.u32 [#allocation7], 4
      %s940 = int_to_ptr.vmem [resolvable:$true] %s939
      %942 = dma.vmem_to_hbm [thread:$0]  %s940, 32, %s6, [#allocation4]
    $region37: #{tpu_custom_call.1} parent=1 // pred_fallthru
      _
    // Predicated region
    $region38: #{tpu_custom_call.1} parent=1 // pred_check
      _
    $region39: #{tpu_custom_call.1} parent=1 // pred_check_branch
      %944 = sbr.rel (0) target = $region41
    $region40: #{tpu_custom_call.1} parent=1 // pred_region
      %945 = dma.done [#allocation4], 32
    $region41: #{tpu_custom_call.1} parent=1 // pred_fallthru
      _
    %946 = vsyncpa [#allocation3], 1
    %947 = vsyncpa [#allocation6], 1
    %948 = vsyncpa [#allocation4], 1

</llo_original>
